<compile_context>
chip_gen: v5e
topology: v5e:2x2
jax: 0.10.0
libtpu: 0.0.40
codegen_flags: <defaults>
</compile_context>

<pallas_src>
import functools
import math

import jax
import jax.numpy as jnp
import numpy as np
from jax.experimental import pallas as pl
from jax.experimental.pallas import tpu as pltpu


# ---------------------------------------------------------------------------
# Parameter setup (mirrors GaussianSmoothing.__init__, dim=2).  The module's
# 2-D kernel is an outer product of 1-D Gaussians followed by a global
# normalization, so it factors exactly into two normalized 1-D kernels.
# ---------------------------------------------------------------------------
def gaussian_kernels_1d(kernel_size, sigma, dim=2):
    if isinstance(kernel_size, (int, float)):
        kernel_size = [int(kernel_size)] * dim
    if isinstance(sigma, (int, float)):
        sigma = [float(sigma)] * dim
    kernels = []
    for size, std in zip(kernel_size, sigma):
        mean = (size - 1) / 2.0
        k = np.exp(-(((np.arange(size, dtype=np.float64) - mean) / std) ** 2) / 2.0)
        k = k / (std * math.sqrt(2.0 * math.pi))
        k = k / k.sum()
        kernels.append(tuple(float(v) for v in k))
    return kernels


# ---------------------------------------------------------------------------
# Pallas kernel: separable depthwise blur on a block of whole planes.
#   x_ref:   (PT, Hp, Wp)  input planes
#   o_ref:   (PT, Ho, Wo)  valid-conv output, already in the final layout
#   tmp_ref: (PT, Hp, Wo)  f32 scratch holding the horizontal pass
# Gaussian taps kh/kw are Python float constants baked at trace time.
# ---------------------------------------------------------------------------
def _blur_kernel(x_ref, o_ref, tmp_ref, *, kh, kw):
    ho, wo = o_ref.shape[1], o_ref.shape[2]

    # Horizontal (lane-axis) pass: tmp[p,h,w] = sum_j kw[j] * x[p,h,w+j].
    # Shifted windows are loaded straight from the ref (no materialized
    # shifted copies); per-tap cast keeps accumulation in f32 without an
    # up-front full-block f32 copy.
    acc = x_ref[:, :, pl.ds(0, wo)].astype(jnp.float32) * kw[0]
    for j in range(1, len(kw)):
        acc = acc + x_ref[:, :, pl.ds(j, wo)].astype(jnp.float32) * kw[j]
    tmp_ref[...] = acc

    # Vertical (sublane-axis) pass: out[p,h,:] = sum_i kh[i] * tmp[p,h+i,:],
    # again with ref-addressed shifted windows from the VMEM scratch.
    # TODO(synk): for kernel_size >~ 9 taps (VALU-bound regime) cast this
    # reduction as a banded (Ho x Hp) matmul on the MXU instead of VALU FMAs.
    out = tmp_ref[:, pl.ds(0, ho), :] * kh[0]
    for i in range(1, len(kh)):
        out = out + tmp_ref[:, pl.ds(i, ho), :] * kh[i]
    o_ref[...] = out.astype(o_ref.dtype)


def _choose_planes_per_block(num_planes, plane_bytes, *,
                             budget_bytes=4 << 20, target_grid=4):
    """Largest divisor of num_planes whose input block fits the VMEM budget
    while still leaving >= min(target_grid, num_planes) grid steps
    (software pipelining + megacore sharding)."""
    cap = max(1, budget_bytes // max(plane_bytes, 1))
    want_grid = min(target_grid, num_planes)
    best = 1
    d = 1
    while d <= min(num_planes, cap):
        if num_planes % d == 0 and num_planes // d >= want_grid:
            best = d
        d += 1
    return best


# ---------------------------------------------------------------------------
# Wrapper (== GaussianSmoothing.forward, dim=2):
#   out = F.conv2d(x, gaussian_weight, padding=padding, groups=C)
# ---------------------------------------------------------------------------
def gaussian_smoothing(x, kernel_size, sigma, padding=0):
    """x: (N, C, H, W) -> (N, C, H_out, W_out), depthwise Gaussian blur."""
    kh, kw = gaussian_kernels_1d(kernel_size, sigma, dim=2)
    kh_len, kw_len = len(kh), len(kw)

    n, c, _, _ = x.shape
    if padding:
        # TODO(synk): fold padding into the kernel via edge masking instead of
        # materializing a padded copy in HBM (saves one pass for padded calls).
        x = jnp.pad(x, ((0, 0), (0, 0), (padding, padding), (padding, padding)))
    hp, wp = x.shape[2], x.shape[3]
    ho, wo = hp - kh_len + 1, wp - kw_len + 1
    if ho <= 0 or wo <= 0:
        raise ValueError(
            f"Gaussian kernel ({kh_len}x{kw_len}) is larger than the padded "
            f"input ({hp}x{wp}); output would be empty.")

    p = n * c
    # Contiguous (free) reshape — no HBM relayout pass.
    xs = x.reshape(p, hp, wp)

    plane_bytes = hp * wp * x.dtype.itemsize
    pt = _choose_planes_per_block(p, plane_bytes)
    assert p % pt == 0
    g = p // pt
    # TODO(synk): if a single plane ever exceeds the VMEM budget (huge H*W),
    # tile H into (Kh-1)-row halo strips via manual DMA (pl.ANY +
    # pltpu.make_async_copy) instead of whole-plane blocks.
    # TODO(synk): for small-W, many-plane inputs, lane-pack PT planes inside
    # the kernel (pltpu.einshape) to densify VPU lanes; skipped here because
    # the kernel is HBM-bound and the DMAs are already fully contiguous.

    kernel = functools.partial(_blur_kernel, kh=kh, kw=kw)

    out = pl.pallas_call(
        kernel,
        out_shape=jax.ShapeDtypeStruct((p, ho, wo), x.dtype),
        grid=(g,),
        in_specs=[pl.BlockSpec((pt, hp, wp), lambda i: (i, 0, 0))],
        out_specs=pl.BlockSpec((pt, ho, wo), lambda i: (i, 0, 0)),
        scratch_shapes=[pltpu.VMEM((pt, hp, wo), jnp.float32)],
        compiler_params=pltpu.CompilerParams(
            dimension_semantics=("parallel",),
            vmem_limit_bytes=48 * 1024 * 1024),
    )(xs)

    # Contiguous (free) reshape back to NCHW — no post-kernel relayout pass.
    return out.reshape(n, c, ho, wo)


if __name__ == "__main__":
    # Module config: channels=4, kernel_size=3, sigma=0.5, dim=2
    channels, kernel_size, sigma = 4, 3, 0.5

    key = jax.random.PRNGKey(0)
    x = jax.random.normal(key, (2, channels, 16, 16), dtype=jnp.float32)

    # Reference: XLA depthwise conv with the module's (C,1,K,K) Gaussian weight
    # (identical per channel; same semantics as F.conv2d groups=C).
    kh, kw = gaussian_kernels_1d(kernel_size, sigma, dim=2)
    w2d = jnp.asarray(np.outer(np.array(kh), np.array(kw)), dtype=jnp.float32)
    weight = jnp.broadcast_to(w2d[None, None], (channels, 1) + w2d.shape)

    def ref_conv(inp, pad):
        return jax.lax.conv_general_dilated(
            inp, weight, window_strides=(1, 1),
            padding=[(pad, pad), (pad, pad)],
            dimension_numbers=("NCHW", "OIHW", "NCHW"),
            feature_group_count=channels)

    # padding=0 (example config)
    out0 = jax.block_until_ready(
        gaussian_smoothing(x, kernel_size, sigma, padding=0))
    ref0 = ref_conv(x, 0)
    assert out0.shape == ref0.shape == (2, channels, 14, 14)
    assert jnp.allclose(out0, ref0, atol=1e-5, rtol=1e-5)

    # padding=1 (exercises the wrapper pad branch of the module semantics)
    out1 = jax.block_until_ready(
        gaussian_smoothing(x, kernel_size, sigma, padding=1))
    ref1 = ref_conv(x, 1)
    assert out1.shape == ref1.shape == (2, channels, 16, 16)
    assert jnp.allclose(out1, ref1, atol=1e-5, rtol=1e-5)

    print("KERNEL_OK")
</pallas_src>

<mosaic_0001>
module attributes {stable_mosaic.version = 11 : i64} {
  func.func @_blur_kernel(%arg0: i32, %arg1: memref<2x16x16xf32, #tpu.memory_space<vmem>>, %arg2: memref<2x14x14xf32, #tpu.memory_space<vmem>>, %arg3: memref<2x16x14xf32, #tpu.memory_space<vmem>>) attributes {dimension_semantics = [#tpu.dimension_semantics<parallel>], iteration_bounds = array<i64: 4>, scalar_prefetch = 0 : i64, scratch_operands = 1 : i64, tpu.core_type = #tpu.core_type<tc>, window_params = [{transform_indices = @transform_0, window_bounds = array<i64: 2, 16, 16>}, {transform_indices = @transform_1, window_bounds = array<i64: 2, 14, 14>}]} {
    %c0 = arith.constant 0 : index
    %c0_0 = arith.constant 0 : index
    %c0_1 = arith.constant 0 : index
    %0 = vector.load %arg1[%c0, %c0_0, %c0_1] : memref<2x16x16xf32, #tpu.memory_space<vmem>>, vector<2x16x14xf32>
    %cst = arith.constant 0.106506981 : f32
    %1 = vector.broadcast %cst : f32 to vector<2x16x14xf32>
    %2 = arith.mulf %0, %1 : vector<2x16x14xf32>
    %c0_2 = arith.constant 0 : index
    %c0_3 = arith.constant 0 : index
    %c1 = arith.constant 1 : index
    %3 = vector.load %arg1[%c0_2, %c0_3, %c1] : memref<2x16x16xf32, #tpu.memory_space<vmem>>, vector<2x16x14xf32>
    %cst_4 = arith.constant 0.786986052 : f32
    %4 = vector.broadcast %cst_4 : f32 to vector<2x16x14xf32>
    %5 = arith.mulf %3, %4 : vector<2x16x14xf32>
    %6 = arith.addf %2, %5 : vector<2x16x14xf32>
    %c0_5 = arith.constant 0 : index
    %c0_6 = arith.constant 0 : index
    %c2 = arith.constant 2 : index
    %7 = vector.load %arg1[%c0_5, %c0_6, %c2] : memref<2x16x16xf32, #tpu.memory_space<vmem>>, vector<2x16x14xf32>
    %cst_7 = arith.constant 0.106506981 : f32
    %8 = vector.broadcast %cst_7 : f32 to vector<2x16x14xf32>
    %9 = arith.mulf %7, %8 : vector<2x16x14xf32>
    %10 = arith.addf %6, %9 : vector<2x16x14xf32>
    %c0_8 = arith.constant 0 : index
    %c0_9 = arith.constant 0 : index
    %c0_10 = arith.constant 0 : index
    %11 = vector.load %arg3[%c0_8, %c0_9, %c0_10] : memref<2x16x14xf32, #tpu.memory_space<vmem>>, vector<2x16x14xf32>
    tpu.vector_store %arg3[%c0_8, %c0_9, %c0_10], %10 {strides = array<i32>} : memref<2x16x14xf32, #tpu.memory_space<vmem>>, vector<2x16x14xf32>,
    %c0_11 = arith.constant 0 : index
    %c0_12 = arith.constant 0 : index
    %c0_13 = arith.constant 0 : index
    %12 = vector.load %arg3[%c0_11, %c0_12, %c0_13] : memref<2x16x14xf32, #tpu.memory_space<vmem>>, vector<2x14x14xf32>
    %cst_14 = arith.constant 0.106506981 : f32
    %13 = vector.broadcast %cst_14 : f32 to vector<2x14x14xf32>
    %14 = arith.mulf %12, %13 : vector<2x14x14xf32>
    %c0_15 = arith.constant 0 : index
    %c1_16 = arith.constant 1 : index
    %c0_17 = arith.constant 0 : index
    %15 = vector.load %arg3[%c0_15, %c1_16, %c0_17] : memref<2x16x14xf32, #tpu.memory_space<vmem>>, vector<2x14x14xf32>
    %cst_18 = arith.constant 0.786986052 : f32
    %16 = vector.broadcast %cst_18 : f32 to vector<2x14x14xf32>
    %17 = arith.mulf %15, %16 : vector<2x14x14xf32>
    %18 = arith.addf %14, %17 : vector<2x14x14xf32>
    %c0_19 = arith.constant 0 : index
    %c2_20 = arith.constant 2 : index
    %c0_21 = arith.constant 0 : index
    %19 = vector.load %arg3[%c0_19, %c2_20, %c0_21] : memref<2x16x14xf32, #tpu.memory_space<vmem>>, vector<2x14x14xf32>
    %cst_22 = arith.constant 0.106506981 : f32
    %20 = vector.broadcast %cst_22 : f32 to vector<2x14x14xf32>
    %21 = arith.mulf %19, %20 : vector<2x14x14xf32>
    %22 = arith.addf %18, %21 : vector<2x14x14xf32>
    %c0_23 = arith.constant 0 : index
    %c0_24 = arith.constant 0 : index
    %c0_25 = arith.constant 0 : index
    %23 = vector.load %arg2[%c0_23, %c0_24, %c0_25] : memref<2x14x14xf32, #tpu.memory_space<vmem>>, vector<2x14x14xf32>
    tpu.vector_store %arg2[%c0_23, %c0_24, %c0_25], %22 {strides = array<i32>} : memref<2x14x14xf32, #tpu.memory_space<vmem>>, vector<2x14x14xf32>,
    return
  }
  func.func @transform_0(%arg0: i32) -> (i32, i32, i32) {
    %c0_i32 = arith.constant 0 : i32
    %c0_i32_0 = arith.constant 0 : i32
    %c0_i32_1 = arith.constant 0 : i32
    return %arg0, %c0_i32, %c0_i32_0 : i32, i32, i32
  }
  func.func @transform_1(%arg0: i32) -> (i32, i32, i32) {
    %c0_i32 = arith.constant 0 : i32
    %c0_i32_0 = arith.constant 0 : i32
    %c0_i32_1 = arith.constant 0 : i32
    return %arg0, %c0_i32, %c0_i32_0 : i32, i32, i32
  }
}

</mosaic_0001>

<llo_original>
// kernel: tpu_custom_call.1
$region0: #{tpu_custom_call.1}
  #allocation0 [shape = 'u32[]', space=smem, size = 0x4, offset = 0x4, fixed_abs, tag = 'smem constant byte address 0x4 - core index']
  #allocation1 [shape = 'u32[72,128]{1,0:T(1,128)}', space=vmem, size = 0x9000, scoped, tag = 'internal scratch']
  #allocation2 [shape = 'f32[2,16,14]{2,1,0:T(8,128)}', space=vmem, size = 0x4000, scoped, tag = 'scratch operand']
  %s0 = inlined_call_operand.hbm [shape: f32[8,16,16], index: 0, kind: input, shape index: {}]
  %s1 = inlined_call_operand.vmem [shape: f32[8,14,14], index: 1, kind: output, shape index: {}]
  %s2 = sld [smem:[#allocation0]]
  $region41: #{tpu_custom_call.1} parent=0
    _
  %s4 = ssub.s32 1, %s2
  %s5 = scalar_select 0, %s4, %s2
  $region1: #{tpu_custom_call.1} parent=0
    #allocation3 [shape = 'u8[32768]{0}', space=vmem, size = 0x8000, scoped, tag = 'input window, operand 0']
    #allocation4 [shape = 's32[2]{0}', space=sflag, size = 0x8, scoped, tag = 'scoped memory for tpu_custom_call.1']
    %6 = vsyncpa [#allocation4], 0
    %s7 = scalar_lea.sflag [#allocation4], 1
    %8 = vsyncpa %s7, 0
    loop: start=0, step=1, limit=6
    $region2: #{tpu_custom_call.1} parent=1 // loop_pre_header
      _
    $region3: #{tpu_custom_call.1} parent=1 // loop_header
      %s10 = sphi 0, %s14
      %p11 = scmp.ge.s32.totalorder %s10, 6
      %s20 = sphi 0, %s22
      %s23 = sphi 0, %s20
      %s24 = sphi 0, %s23
      %s40 = sphi 0, %s24
      %s46 = sphi 0, %s48
      %s49 = sphi 0, %s46
      %s50 = sphi 0, %s49
      %s66 = sphi 0, %s50
    $region4: #{tpu_custom_call.1} parent=1 // loop_header_branch
      %13 = sbr.rel (%p11) target = $region8
    $region5: #{tpu_custom_call.1} parent=1 // loop_body
      %s15 = ssub.s32 %s10, 1
      %s16 = ssub.s32 %s10, 2
      %s17 = sadd.s32 %s10, 1
      %s18 = ssub.s32 %s10, %s17
      %p19 = scmp.eq.s32.totalorder %s18, 0
      %s21 = sadd.s32 %s20, 1
      %s22 = scalar_select %p19, %s20, %s21
      %p25 = pneg %p19
      %p26 = scmp.eq.s32.totalorder %s10, 3
      %p27 = por %p25, %p26
      %p28 = scmp.ne.s32.totalorder %s20, %s23
      %p29 = scmp.eq.s32.totalorder %s10, 0
      %p30 = por %p28, %p29
      %p31 = scmp.ne.s32.totalorder %s20, %s23
      %p32 = scmp.eq.s32.totalorder %s15, 3
      %p33 = por %p31, %p32
      %p34 = scmp.ne.s32.totalorder %s23, %s24
      %p35 = scmp.eq.s32.totalorder %s15, 0
      %p36 = por %p34, %p35
      %p37 = scmp.ne.s32.totalorder %s23, %s24
      %p38 = scmp.eq.s32.totalorder %s16, 3
      %p39 = por %p37, %p38
      %p41 = scmp.ne.s32.totalorder %s24, %s40
      %p42 = scmp.eq.s32.totalorder %s16, 0
      %p43 = por %p41, %p42
      %s44 = ssub.s32 %s10, %s17
      %p45 = scmp.eq.s32.totalorder %s44, 0
      %s47 = sadd.s32 %s46, 1
      %s48 = scalar_select %p45, %s46, %s47
      %p51 = pneg %p45
      %p52 = scmp.eq.s32.totalorder %s10, 3
      %p53 = por %p51, %p52
      %p54 = scmp.ne.s32.totalorder %s46, %s49
      %p55 = scmp.eq.s32.totalorder %s10, 0
      %p56 = por %p54, %p55
      %p57 = scmp.ne.s32.totalorder %s46, %s49
      %p58 = scmp.eq.s32.totalorder %s15, 3
      %p59 = por %p57, %p58
      %p60 = scmp.ne.s32.totalorder %s49, %s50
      %p61 = scmp.eq.s32.totalorder %s15, 0
      %p62 = por %p60, %p61
      %p63 = scmp.ne.s32.totalorder %s49, %s50
      %p64 = scmp.eq.s32.totalorder %s16, 3
      %p65 = por %p63, %p64
      %p67 = scmp.ne.s32.totalorder %s50, %s66
      %p68 = scmp.eq.s32.totalorder %s16, 0
      %p69 = por %p67, %p68
      %p70 = scmp.le.s32.totalorder 1, %s10
      %p71 = scmp.lt.s32.totalorder %s10, 5
      %p72 = pnand %p70, %p71
      %p73 = pneg %p72
      // Predicated region
      $region9: #{tpu_custom_call.1} parent=5 // pred_check
        _
      $region10: #{tpu_custom_call.1} parent=5 // pred_check_branch
        %75 = sbr.rel (%p72) target = $region12
      $region11: #{tpu_custom_call.1} parent=5 // pred_region
        %s76 = ssub.s32 %s10, 1
      $region12: #{tpu_custom_call.1} parent=5 // pred_fallthru
        _
      %p77 = scmp.lt.s32.totalorder %s10, 4
      // Predicated region
      $region13: #{tpu_custom_call.1} parent=5 // pred_check
        %p78 = pneg %p77
      $region14: #{tpu_custom_call.1} parent=5 // pred_check_branch
        %80 = sbr.rel (%p78) target = $region16
      $region15: #{tpu_custom_call.1} parent=5 // pred_region
        // Predicated region
        $region17: #{tpu_custom_call.1} parent=15 // pred_check
          %p81 = pneg %p30
        $region18: #{tpu_custom_call.1} parent=15 // pred_check_branch
          %83 = sbr.rel (%p81) target = $region20
        $region19: #{tpu_custom_call.1} parent=15 // pred_region
          %s84 = sand.u32 %s20, 1
          %s85 = scalar_lea.sflag [#allocation4], %s84
          %s86 = sand.u32 %s20, 1
          %s87 = smul.addr %s86, 32
          %s88 = scalar_lea.vmem [#allocation3], %s87
          %s89 = smul.u32 2, %s10
          %91 = vsyncadd %s85, 0
          %s92 = smul.addr %s89, 2
          %s93 = smul.addr %s92, 8
          %s94 = scalar_lea.hbm %s0, %s93
          %s95 = sshll.u32 %s94, 4
          %s96 = int_to_ptr.hbm [resolvable:$true] %s95
          %s97 = sshll.u32 %s88, 4
          %s98 = int_to_ptr.vmem [resolvable:$true] %s97
          %103 = dma.hbm_to_vmem [thread:$0]  %s96, 512, %s98, %s85, 128, 128, 8
        $region20: #{tpu_custom_call.1} parent=15 // pred_fallthru
          _
      $region16: #{tpu_custom_call.1} parent=5 // pred_fallthru
        _
      %p104 = scmp.le.s32.totalorder 1, %s10
      %p105 = scmp.lt.s32.totalorder %s10, 5
      %p106 = pnand %p104, %p105
      %p107 = pneg %p106
      // Predicated region
      $region21: #{tpu_custom_call.1} parent=5 // pred_check
        _
      $region22: #{tpu_custom_call.1} parent=5 // pred_check_branch
        %109 = sbr.rel (%p106) target = $region24
      $region23: #{tpu_custom_call.1} parent=5 // pred_region
        %s110 = ssub.s32 %s10, 1
        %s111 = sand.u32 %s23, 1
        %s112 = scalar_lea.sflag [#allocation4], %s111
        %s113 = sand.u32 %s23, 1
        %s114 = smul.addr %s113, 32
        %s115 = scalar_lea.vmem [#allocation3], %s114
        // Predicated region
        $region25: #{tpu_custom_call.1} parent=23 // pred_check
          %p116 = pneg %p36
        $region26: #{tpu_custom_call.1} parent=23 // pred_check_branch
          %118 = sbr.rel (%p116) target = $region28
        $region27: #{tpu_custom_call.1} parent=23 // pred_region
          %120 = dma.done %s112, 512
        $region28: #{tpu_custom_call.1} parent=23 // pred_fallthru
          _
        %s121 = sand.u32 %s23, 1
        %s122 = scalar_lea.sflag [#allocation4], %s121
        %s123 = sand.u32 %s23, 1
        %s124 = smul.addr %s123, 32
        %s125 = scalar_lea.vmem [#allocation3], %s124
        %p126 = pneg %p36
        %p127 = pneg %p33
        %p128 = pneg %p62
        %p129 = pneg %p59
        %s130 = smul.u32 2, %s15
        %p131 = scmp.lt.s32.totalorder %s130, 7
        %s132 = scalar_select %p131, %s130, 7
        %s133 = smul.addr %s132, 2
        %s134 = smul.addr %s133, 8
        %s135 = scalar_lea.vmem %s1, %s134
        %s136 = smul.u32 2, %s15
        %s137 = smul.u32 2, %s15
        %p138 = scmp.lt.s32.totalorder %s137, 7
        %s139 = scalar_select %p138, %s137, 7
        %s140 = smul.addr %s139, 2
        %s141 = smul.addr %s140, 8
        %s142 = scalar_lea.vmem %s1, %s141
        %s143 = smul.u32 2, %s15
        %v144 = vld [vmem:[%s115] sm:$0xff]
        %v145 = vld [vmem:[%s115 + $0x8] sm:$0xff]
        %v146 = vld [vmem:[%s115 + $0x10] sm:$0xff]
        %v147 = vld [vmem:[%s115 + $0x18] sm:$0xff]
        %v148 = vmul.f32 %v144, 0.10650698
        %v149 = vmul.f32 %v145, 0.10650698
        %v150 = vmul.f32 %v146, 0.10650698
        %v151 = vmul.f32 %v147, 0.10650698
        %v152 = vmul.f32 %v144, 0.78698605
        %v153 = vmul.f32 %v145, 0.78698605
        %v154 = vmul.f32 %v146, 0.78698605
        %v155 = vmul.f32 %v147, 0.78698605
        %160 = vrot.lane.b32.xlu0 %v152, 127
        %v161 = vpop.permute.xlu0 %160
        %162 = vrot.lane.b32.xlu0 %v153, 127
        %v163 = vpop.permute.xlu0 %162
        %164 = vrot.lane.b32.xlu0 %v154, 127
        %v165 = vpop.permute.xlu0 %164
        %166 = vrot.lane.b32.xlu0 %v155, 127
        %v167 = vpop.permute.xlu0 %166
        %v172 = vadd.f32 %v148, %v161
        %v173 = vadd.f32 %v149, %v163
        %v174 = vadd.f32 %v150, %v165
        %v175 = vadd.f32 %v151, %v167
        %180 = vrot.lane.b32.xlu0 %v148, 126
        %v181 = vpop.permute.xlu0 %180
        %182 = vrot.lane.b32.xlu0 %v149, 126
        %v183 = vpop.permute.xlu0 %182
        %184 = vrot.lane.b32.xlu0 %v150, 126
        %v185 = vpop.permute.xlu0 %184
        %186 = vrot.lane.b32.xlu0 %v151, 126
        %v187 = vpop.permute.xlu0 %186
        %v192 = vadd.f32 %v172, %v181
        %v193 = vadd.f32 %v173, %v183
        %v194 = vadd.f32 %v174, %v185
        %v195 = vadd.f32 %v175, %v187
        %vm196 = vcmask 113664
        %197 = vst.msk [vmem:[#allocation2] sm:$0xff] %vm196, %v192
        %198 = vst.msk [vmem:[#allocation2 + $0x8] sm:$0xff] %vm196, %v193
        %199 = vst.msk [vmem:[#allocation2 + $0x10] sm:$0xff] %vm196, %v194
        %200 = vst.msk [vmem:[#allocation2 + $0x18] sm:$0xff] %vm196, %v195
        %v201 = vld [vmem:[#allocation2] sm:$0xff]
        %v202 = vld [vmem:[#allocation2 + $0x8] sm:$0x3f]
        %v203 = vld [vmem:[#allocation2 + $0x10] sm:$0xff]
        %v204 = vld [vmem:[#allocation2 + $0x18] sm:$0x3f]
        %v205 = vmul.f32 %v201, 0.10650698
        %v206 = vmul.f32 %v202, 0.10650698
        %v207 = vmul.f32 %v203, 0.10650698
        %v208 = vmul.f32 %v204, 0.10650698
        %v209 = vld [vmem:[#allocation2 + $0x1] sm:$0xff]
        %v210 = vld [vmem:[#allocation2 + $0x9] sm:$0x3f]
        %v211 = vld [vmem:[#allocation2 + $0x11] sm:$0xff]
        %v212 = vld [vmem:[#allocation2 + $0x19] sm:$0x3f]
        %v213 = vmul.f32 %v209, 0.78698605
        %v214 = vmul.f32 %v210, 0.78698605
        %v215 = vmul.f32 %v211, 0.78698605
        %v216 = vmul.f32 %v212, 0.78698605
        %v217 = vadd.f32 %v205, %v213
        %v218 = vadd.f32 %v206, %v214
        %v219 = vadd.f32 %v207, %v215
        %v220 = vadd.f32 %v208, %v216
        %v221 = vld [vmem:[#allocation2 + $0x2] sm:$0xff]
        %v222 = vld [vmem:[#allocation2 + $0xa] sm:$0x3f]
        %v223 = vld [vmem:[#allocation2 + $0x12] sm:$0xff]
        %v224 = vld [vmem:[#allocation2 + $0x1a] sm:$0x3f]
        %v225 = vmul.f32 %v221, 0.10650698
        %v226 = vmul.f32 %v222, 0.10650698
        %v227 = vmul.f32 %v223, 0.10650698
        %v228 = vmul.f32 %v224, 0.10650698
        %v229 = vadd.f32 %v217, %v225
        %v230 = vadd.f32 %v218, %v226
        %v231 = vadd.f32 %v219, %v227
        %v232 = vadd.f32 %v220, %v228
        %233 = vst.msk [vmem:[%s142] sm:$0xff] %vm196, %v229
        %vm234 = vcmask 111616
        %235 = vst.msk [vmem:[%s142 + $0x8] sm:$0x3f] %vm234, %v230
        %236 = vst.msk [vmem:[%s142 + $0x10] sm:$0xff] %vm196, %v231
        %237 = vst.msk [vmem:[%s142 + $0x18] sm:$0x3f] %vm234, %v232
        %s238 = smul.u32 2, %s15
        %p239 = scmp.lt.s32.totalorder %s238, 7
        %s240 = scalar_select %p239, %s238, 7
        %s241 = smul.addr %s240, 2
        %s242 = smul.addr %s241, 8
        %s243 = scalar_lea.vmem %s1, %s242
        // Predicated region
        $region29: #{tpu_custom_call.1} parent=23 // pred_check
          %p244 = pneg %p59
        $region30: #{tpu_custom_call.1} parent=23 // pred_check_branch
          %246 = sbr.rel (%p244) target = $region32
        $region31: #{tpu_custom_call.1} parent=23 // pred_region
          %s247 = smul.u32 2, %s15
        $region32: #{tpu_custom_call.1} parent=23 // pred_fallthru
          _
      $region24: #{tpu_custom_call.1} parent=5 // pred_fallthru
        _
      %p248 = scmp.le.s32.totalorder 2, %s10
      // Predicated region
      $region33: #{tpu_custom_call.1} parent=5 // pred_check
        %p249 = pneg %p248
      $region34: #{tpu_custom_call.1} parent=5 // pred_check_branch
        %251 = sbr.rel (%p249) target = $region36
      $region35: #{tpu_custom_call.1} parent=5 // pred_region
        %s252 = ssub.s32 %s10, 2
        // Predicated region
        $region37: #{tpu_custom_call.1} parent=35 // pred_check
          %p253 = pneg %p65
        $region38: #{tpu_custom_call.1} parent=35 // pred_check_branch
          %255 = sbr.rel (%p253) target = $region40
        $region39: #{tpu_custom_call.1} parent=35 // pred_region
          %s256 = smul.u32 2, %s16
          %p257 = scmp.lt.s32.totalorder %s256, 7
          %s258 = scalar_select %p257, %s256, 7
          %s259 = smul.addr %s258, 2
          %s260 = smul.addr %s259, 8
          %s261 = scalar_lea.vmem %s1, %s260
        $region40: #{tpu_custom_call.1} parent=35 // pred_fallthru
          _
      $region36: #{tpu_custom_call.1} parent=5 // pred_fallthru
        _
    $region6: #{tpu_custom_call.1} parent=1 // loop_footer
      %s14 = sadd.s32 1, %s10
    $region7: #{tpu_custom_call.1} parent=1 // loop_footer_branch
      %9 = sbr.rel target = $region3
    $region8: #{tpu_custom_call.1} parent=1 // loop_exit
      _
    %262 = vsyncpa [#allocation4], 1
    %s263 = scalar_lea.sflag [#allocation4], 1
    %264 = vsyncpa %s263, 1

</llo_original>
